<compile_context>
chip_gen: v7x
topology: tpu7x:2x2x1
jax: 0.10.0
libtpu: 0.0.40
codegen_flags: <defaults>
</compile_context>

<pallas_src>
import jax
import jax.numpy as jnp
from jax.experimental import pallas as pl
from jax.experimental.pallas import tpu as pltpu

_LANES = 128
_SUBLANES = 8


def _partial_counts_jnp(o, t):
    """Tiny pure-jnp masked counts (used only for the <128-element tail)."""
    of = o.astype(jnp.float32)
    tf = t.astype(jnp.float32)
    valid = tf > 0.0
    err = jnp.logical_and(valid, jnp.abs(of - tf) > 3.0)
    return jnp.sum(err, dtype=jnp.int32), jnp.sum(valid, dtype=jnp.int32)


def _choose_block_rows(rows, requested):
    """Pick (block_rows, num_blocks) honoring the (8,128) block rules."""
    if rows <= _SUBLANES:
        return rows, 1                                    # one full-array block
    req = max(_SUBLANES, (requested // _SUBLANES) * _SUBLANES)
    if req >= rows:
        if rows >= 2 * _SUBLANES:
            # Split into >=2 blocks so v7x can shard the grid over both TCs.
            half = ((rows + 1) // 2 + _SUBLANES - 1) // _SUBLANES * _SUBLANES
            return half, pl.cdiv(rows, half)
        return rows, 1                                    # full-array block (9..15 rows)
    return req, pl.cdiv(rows, req)


def _d1_counts_pallas(o2, t2, rows, block_rows, num_blocks):
    """Run the Pallas kernel on a (rows, 128) view; return (err_cnt, valid_cnt)."""
    needs_mask = (rows % block_rows) != 0

    def kernel(pred_ref, tgt_ref, err_ref, val_ref):
        p = pred_ref[...].astype(jnp.float32)
        g = tgt_ref[...].astype(jnp.float32)
        valid = g > 0.0
        bad = jnp.abs(p - g) > 3.0

        def write(v_bool, e_bool):
            # Sublane-only reduction; lane axis kept intact for lane-dense stores.
            err_ref[...] = jnp.sum(e_bool.astype(jnp.int32), axis=0,
                                   keepdims=True).reshape(1, 1, _LANES)
            val_ref[...] = jnp.sum(v_bool.astype(jnp.int32), axis=0,
                                   keepdims=True).reshape(1, 1, _LANES)

        if not needs_mask:
            # Common path: every block is fully in-bounds, no row mask at all.
            write(valid, jnp.logical_and(valid, bad))
        else:
            i = pl.program_id(0)
            last = num_blocks - 1

            @pl.when(i != last)
            def _():
                write(valid, jnp.logical_and(valid, bad))

            @pl.when(i == last)
            def _():
                # Only the (partial) last block pays for the in-bounds mask.
                row_ids = i * block_rows + jax.lax.broadcasted_iota(
                    jnp.int32, (block_rows, _LANES), 0)
                v = jnp.logical_and(valid, row_ids < rows)
                write(v, jnp.logical_and(v, bad))

    elem_bytes = o2.dtype.itemsize + t2.dtype.itemsize
    cost = pl.CostEstimate(
        flops=5 * rows * _LANES,
        transcendentals=0,
        bytes_accessed=rows * _LANES * elem_bytes + 2 * num_blocks * _LANES * 4,
    )

    err_part, val_part = pl.pallas_call(
        kernel,
        out_shape=(
            jax.ShapeDtypeStruct((num_blocks, 1, _LANES), jnp.int32),
            jax.ShapeDtypeStruct((num_blocks, 1, _LANES), jnp.int32),
        ),
        grid_spec=pltpu.PrefetchScalarGridSpec(
            num_scalar_prefetch=0,
            grid=(num_blocks,),
            in_specs=[
                pl.BlockSpec((block_rows, _LANES), lambda i: (i, 0)),
                pl.BlockSpec((block_rows, _LANES), lambda i: (i, 0)),
            ],
            out_specs=(
                pl.BlockSpec((1, 1, _LANES), lambda i: (i, 0, 0)),
                pl.BlockSpec((1, 1, _LANES), lambda i: (i, 0, 0)),
            ),
        ),
        compiler_params=pltpu.CompilerParams(
            dimension_semantics=("parallel",),
            vmem_limit_bytes=32 << 20,
        ),
        cost_estimate=cost,
    )(o2, t2)

    # int32 partials are exact; the final reduction over (num_blocks, 1, 128)
    # is tiny and done by XLA.
    return jnp.sum(err_part), jnp.sum(val_part)


def d1_metric(outputs, target, *, block_rows=None):
    """Pallas TPU implementation of D1_metric.forward(outputs, target)."""
    assert outputs.shape == target.shape

    # Flatten (free for contiguous NCHW); keep the HBM dtype.
    o = outputs.reshape(-1)
    t = target.reshape(-1)
    n = o.shape[0]

    if block_rows is None:
        # ~4 MiB per input tile (dtype-aware): 8192 rows f32 / 16384 rows bf16.
        block_rows = (4 << 20) // (_LANES * jnp.dtype(o.dtype).itemsize)

    n_main = (n // _LANES) * _LANES
    err_cnt = jnp.zeros((), jnp.int32)
    val_cnt = jnp.zeros((), jnp.int32)

    if n_main > 0:
        rows = n_main // _LANES
        if n_main == n:
            o2 = o.reshape(rows, _LANES)      # free reshape, no copy
            t2 = t.reshape(rows, _LANES)
        else:
            o2 = o[:n_main].reshape(rows, _LANES)
            t2 = t[:n_main].reshape(rows, _LANES)
        br, nb = _choose_block_rows(rows, block_rows)
        e, v = _d1_counts_pallas(o2, t2, rows, br, nb)
        err_cnt = err_cnt + e
        val_cnt = val_cnt + v

    if n_main < n:
        # TODO(synk): the <128-element tail (and the prefix slice it forces)
        # runs outside the kernel; a manual-DMA pl.ANY path could avoid any copy.
        e, v = _partial_counts_jnp(o[n_main:], t[n_main:])
        err_cnt = err_cnt + e
        val_cnt = val_cnt + v

    # If no target element is > 0 this divides by zero (NaN/Inf), matching the
    # PyTorch reference behaviour.
    return err_cnt.astype(jnp.float32) / val_cnt.astype(jnp.float32)


def _d1_reference(outputs, target):
    """Pure-JAX reference mirroring the PyTorch module."""
    mask = target > 0
    e = jnp.abs(outputs - target)
    err = (e > 3) & mask
    return jnp.sum(err.astype(jnp.float32)) / jnp.sum(mask.astype(jnp.float32))


if __name__ == "__main__":
    key = jax.random.PRNGKey(0)

    # Shapes chosen to exercise every code path:
    #   (2,1,16,16) n=512   -> single full-array block (rows=4)
    #   (2,1,32,32) n=2048  -> 2 blocks, mask-free fast path
    #   (3,1,32,32) n=3072  -> 2 blocks, partial last block (masked path)
    #   (2,1,15,17) n=510   -> kernel on 128-aligned prefix + jnp tail
    #   (1,1,5,7)   n=35    -> pure jnp tail (no kernel)
    shapes = [(2, 1, 16, 16), (2, 1, 32, 32), (3, 1, 32, 32),
              (2, 1, 15, 17), (1, 1, 5, 7)]

    for shape in shapes:
        key, k1, k2, k3 = jax.random.split(key, 4)
        outputs = jax.random.uniform(k1, shape, jnp.float32, 0.0, 20.0)
        target = jax.random.uniform(k2, shape, jnp.float32, 0.0, 20.0)
        # Make some target entries non-positive so the mask actually filters.
        drop = jax.random.bernoulli(k3, 0.3, shape)
        target = jnp.where(drop, 0.0, target)

        result = jax.block_until_ready(d1_metric(outputs, target))
        ref = _d1_reference(outputs, target)
        assert bool(jnp.allclose(result, ref, atol=1e-6)), (shape, result, ref)

    print("KERNEL_OK")
</pallas_src>

<mosaic_0001>
module attributes {stable_mosaic.version = 11 : i64} {
  func.func @kernel(%arg0: i32, %arg1: memref<4x128xf32, #tpu.memory_space<vmem>>, %arg2: memref<4x128xf32, #tpu.memory_space<vmem>>, %arg3: memref<1x1x128xi32, #tpu.memory_space<vmem>>, %arg4: memref<1x1x128xi32, #tpu.memory_space<vmem>>) attributes {dimension_semantics = [#tpu.dimension_semantics<parallel>], iteration_bounds = array<i64: 1>, scalar_prefetch = 0 : i64, scratch_operands = 0 : i64, tpu.core_type = #tpu.core_type<tc>, window_params = [{transform_indices = @transform_0, window_bounds = array<i64: 4, 128>}, {transform_indices = @transform_1, window_bounds = array<i64: 4, 128>}, {transform_indices = @transform_2, window_bounds = array<i64: 1, 1, 128>}, {transform_indices = @transform_3, window_bounds = array<i64: 1, 1, 128>}]} {
    %c0 = arith.constant 0 : index
    %c0_0 = arith.constant 0 : index
    %0 = vector.load %arg1[%c0, %c0_0] : memref<4x128xf32, #tpu.memory_space<vmem>>, vector<4x128xf32>
    %c0_1 = arith.constant 0 : index
    %c0_2 = arith.constant 0 : index
    %1 = vector.load %arg2[%c0_1, %c0_2] : memref<4x128xf32, #tpu.memory_space<vmem>>, vector<4x128xf32>
    %cst = arith.constant 0.000000e+00 : f32
    %2 = vector.broadcast %cst : f32 to vector<4x128xf32>
    %3 = arith.cmpf ogt, %1, %2 : vector<4x128xf32>
    %4 = arith.subf %0, %1 : vector<4x128xf32>
    %5 = math.absf %4 : vector<4x128xf32>
    %cst_3 = arith.constant 3.000000e+00 : f32
    %6 = vector.broadcast %cst_3 : f32 to vector<4x128xf32>
    %7 = arith.cmpf ogt, %5, %6 : vector<4x128xf32>
    %8 = arith.andi %3, %7 : vector<4x128xi1>
    %9 = arith.extui %8 : vector<4x128xi1> to vector<4x128xi32>
    %cst_4 = arith.constant dense<0> : vector<128xi32>
    %10 = vector.multi_reduction <add>, %9, %cst_4 [0] : vector<4x128xi32> to vector<128xi32>
    %11 = vector.shape_cast %10 : vector<128xi32> to vector<1x128xi32>
    %12 = vector.shape_cast %11 : vector<1x128xi32> to vector<1x1x128xi32>
    %c0_5 = arith.constant 0 : index
    %c0_6 = arith.constant 0 : index
    %c0_7 = arith.constant 0 : index
    %13 = vector.load %arg3[%c0_5, %c0_6, %c0_7] : memref<1x1x128xi32, #tpu.memory_space<vmem>>, vector<1x1x128xi32>
    tpu.vector_store %arg3[%c0_5, %c0_6, %c0_7], %12 {strides = array<i32>} : memref<1x1x128xi32, #tpu.memory_space<vmem>>, vector<1x1x128xi32>,
    %14 = arith.extui %3 : vector<4x128xi1> to vector<4x128xi32>
    %cst_8 = arith.constant dense<0> : vector<128xi32>
    %15 = vector.multi_reduction <add>, %14, %cst_8 [0] : vector<4x128xi32> to vector<128xi32>
    %16 = vector.shape_cast %15 : vector<128xi32> to vector<1x128xi32>
    %17 = vector.shape_cast %16 : vector<1x128xi32> to vector<1x1x128xi32>
    %c0_9 = arith.constant 0 : index
    %c0_10 = arith.constant 0 : index
    %c0_11 = arith.constant 0 : index
    %18 = vector.load %arg4[%c0_9, %c0_10, %c0_11] : memref<1x1x128xi32, #tpu.memory_space<vmem>>, vector<1x1x128xi32>
    tpu.vector_store %arg4[%c0_9, %c0_10, %c0_11], %17 {strides = array<i32>} : memref<1x1x128xi32, #tpu.memory_space<vmem>>, vector<1x1x128xi32>,
    return
  }
  func.func @transform_0(%arg0: i32) -> (i32, i32) {
    %c0_i32 = arith.constant 0 : i32
    %c0_i32_0 = arith.constant 0 : i32
    return %arg0, %c0_i32 : i32, i32
  }
  func.func @transform_1(%arg0: i32) -> (i32, i32) {
    %c0_i32 = arith.constant 0 : i32
    %c0_i32_0 = arith.constant 0 : i32
    return %arg0, %c0_i32 : i32, i32
  }
  func.func @transform_2(%arg0: i32) -> (i32, i32, i32) {
    %c0_i32 = arith.constant 0 : i32
    %c0_i32_0 = arith.constant 0 : i32
    %c0_i32_1 = arith.constant 0 : i32
    return %arg0, %c0_i32, %c0_i32_0 : i32, i32, i32
  }
  func.func @transform_3(%arg0: i32) -> (i32, i32, i32) {
    %c0_i32 = arith.constant 0 : i32
    %c0_i32_0 = arith.constant 0 : i32
    %c0_i32_1 = arith.constant 0 : i32
    return %arg0, %c0_i32, %c0_i32_0 : i32, i32, i32
  }
}

</mosaic_0001>

<llo_original>
// kernel: tpu_custom_call.1
$region0: #{tpu_custom_call.1}
  #allocation0 [shape = 'u32[]', space=smem, size = 0x4, offset = 0x4, fixed_abs, tag = 'smem constant byte address 0x4 - core index']
  #allocation1 [shape = 'u32[144,128]{1,0:T(1,128)}', space=vmem, size = 0x12000, scoped, tag = 'internal scratch']
  %s0 = inlined_call_operand.hbm [shape: f32[4,128], index: 0, kind: input, shape index: {}]
  %s1 = inlined_call_operand.hbm [shape: f32[4,128], index: 1, kind: input, shape index: {}]
  %s2 = inlined_call_operand.hbm [shape: s32[1,1,128], index: 2, kind: output, shape index: {0}]
  %s3 = inlined_call_operand.hbm [shape: s32[1,1,128], index: 3, kind: output, shape index: {1}]
  %4 = xla_tuple %s2, %s3
  %s5 = sld [smem:[#allocation0]]
  $region34: #{tpu_custom_call.1} parent=0
    _
  %s7 = ssub.s32 1, %s5
  %s8 = scalar_select 0, %s7, %s5
  $region1: #{tpu_custom_call.1} parent=0
    #allocation2 [shape = 'u8[2048]{0}', space=vmem, size = 0x800, scoped, tag = 'input window, operand 0, single buffered']
    #allocation3 [shape = 's32[1]{0}', space=sflag, size = 0x4, scoped, tag = 'scoped memory for tpu_custom_call.1']
    #allocation4 [shape = 's32[1]{0}', space=sflag, size = 0x4, scoped, tag = 'scoped memory for tpu_custom_call.1']
    #allocation5 [shape = 'u8[2048]{0}', space=vmem, size = 0x800, scoped, tag = 'input window, operand 1, single buffered']
    #allocation6 [shape = 's32[1]{0}', space=sflag, size = 0x4, scoped, tag = 'scoped memory for tpu_custom_call.1']
    #allocation7 [shape = 'u8[512]{0}', space=vmem, size = 0x400, scoped, tag = 'output window, operand 0, single buffered']
    #allocation8 [shape = 'u8[512]{0}', space=vmem, size = 0x400, scoped, tag = 'output window, operand 1, single buffered']
    #allocation9 [shape = 's32[1]{0}', space=sflag, size = 0x4, scoped, tag = 'scoped memory for tpu_custom_call.1']
    %9 = vsyncpa [#allocation3], 0
    %10 = vsyncpa [#allocation6], 0
    %11 = vsyncpa [#allocation4], 0
    %12 = vsyncpa [#allocation9], 0
    // Predicated region
    $region2: #{tpu_custom_call.1} parent=1 // pred_check
      _
    $region3: #{tpu_custom_call.1} parent=1 // pred_check_branch
      %14 = sbr.rel (0) target = $region5
    $region4: #{tpu_custom_call.1} parent=1 // pred_region
      %s16 = ssub.s32 64, 64
      %17 = vsyncadd [#allocation3], %s16
      %s19 = sshll.u32 [#allocation2], 4
      %s20 = int_to_ptr.vmem [resolvable:$true] %s19
      %22 = dma.hbm_to_vmem [thread:$0]  %s0, 64, %s20, [#allocation3]
    $region5: #{tpu_custom_call.1} parent=1 // pred_fallthru
      _
    // Predicated region
    $region6: #{tpu_custom_call.1} parent=1 // pred_check
      _
    $region7: #{tpu_custom_call.1} parent=1 // pred_check_branch
      %24 = sbr.rel (0) target = $region9
    $region8: #{tpu_custom_call.1} parent=1 // pred_region
      %s26 = ssub.s32 64, 64
      %27 = vsyncadd [#allocation6], %s26
      %s29 = sshll.u32 [#allocation5], 4
      %s30 = int_to_ptr.vmem [resolvable:$true] %s29
      %32 = dma.hbm_to_vmem [thread:$0]  %s1, 64, %s30, [#allocation6]
    $region9: #{tpu_custom_call.1} parent=1 // pred_fallthru
      _
    // Predicated region
    $region10: #{tpu_custom_call.1} parent=1 // pred_check
      _
    $region11: #{tpu_custom_call.1} parent=1 // pred_check_branch
      %34 = sbr.rel (0) target = $region13
    $region12: #{tpu_custom_call.1} parent=1 // pred_region
      %35 = dma.done [#allocation3], 64
    $region13: #{tpu_custom_call.1} parent=1 // pred_fallthru
      _
    // Predicated region
    $region14: #{tpu_custom_call.1} parent=1 // pred_check
      _
    $region15: #{tpu_custom_call.1} parent=1 // pred_check_branch
      %37 = sbr.rel (0) target = $region17
    $region16: #{tpu_custom_call.1} parent=1 // pred_region
      %38 = dma.done [#allocation6], 64
    $region17: #{tpu_custom_call.1} parent=1 // pred_fallthru
      _
    %v39 = vld [vmem:[#allocation2] sm:$0xf]
    %v40 = vld [vmem:[#allocation5] sm:$0xf]
    %vm41 = vcmp.gt.f32.partialorder %v40, 0.0
    %v42 = vsub.f32 %v39, %v40
    %v43 = vand.u32 2147483647, %v42
    %vm44 = vcmp.gt.f32.partialorder %v43, 3.0
    %vm45 = vmand %vm41, %vm44
    %v46 = vsel %vm45, 1, 0
    %vm47 = vcmask 1043456
    %v48 = vsel %vm47, %v46, 0
    %v49 = vrot.slane %v48, 4
    %v50 = vadd.s32 %v48, %v49
    %v51 = vrot.slane %v50, 2
    %v52 = vadd.s32 %v50, %v51
    %v53 = vrot.slane %v52, 1
    %v54 = vadd.s32 %v52, %v53
    %55 = vst [vmem:[#allocation7] sm:$0x1] %v54
    %v56 = vsel %vm41, 1, 0
    %v57 = vsel %vm47, %v56, 0
    %v58 = vrot.slane %v57, 4
    %v59 = vadd.s32 %v57, %v58
    %v60 = vrot.slane %v59, 2
    %v61 = vadd.s32 %v59, %v60
    %v62 = vrot.slane %v61, 1
    %v63 = vadd.s32 %v61, %v62
    %64 = vst [vmem:[#allocation8] sm:$0x1] %v63
    // Predicated region
    $region18: #{tpu_custom_call.1} parent=1 // pred_check
      _
    $region19: #{tpu_custom_call.1} parent=1 // pred_check_branch
      %66 = sbr.rel (0) target = $region21
    $region20: #{tpu_custom_call.1} parent=1 // pred_region
      %s68 = ssub.s32 16, 16
      %69 = vsyncadd [#allocation4], %s68
      %s71 = sshll.u32 [#allocation7], 4
      %s72 = int_to_ptr.vmem [resolvable:$true] %s71
      %74 = dma.vmem_to_hbm [thread:$0]  %s72, 16, %s2, [#allocation4]
    $region21: #{tpu_custom_call.1} parent=1 // pred_fallthru
      _
    // Predicated region
    $region22: #{tpu_custom_call.1} parent=1 // pred_check
      _
    $region23: #{tpu_custom_call.1} parent=1 // pred_check_branch
      %76 = sbr.rel (0) target = $region25
    $region24: #{tpu_custom_call.1} parent=1 // pred_region
      %s78 = ssub.s32 16, 16
      %79 = vsyncadd [#allocation9], %s78
      %s81 = sshll.u32 [#allocation8], 4
      %s82 = int_to_ptr.vmem [resolvable:$true] %s81
      %84 = dma.vmem_to_hbm [thread:$0]  %s82, 16, %s3, [#allocation9]
    $region25: #{tpu_custom_call.1} parent=1 // pred_fallthru
      _
    // Predicated region
    $region26: #{tpu_custom_call.1} parent=1 // pred_check
      _
    $region27: #{tpu_custom_call.1} parent=1 // pred_check_branch
      %86 = sbr.rel (0) target = $region29
    $region28: #{tpu_custom_call.1} parent=1 // pred_region
      %87 = dma.done [#allocation4], 16
    $region29: #{tpu_custom_call.1} parent=1 // pred_fallthru
      _
    // Predicated region
    $region30: #{tpu_custom_call.1} parent=1 // pred_check
      _
    $region31: #{tpu_custom_call.1} parent=1 // pred_check_branch
      %89 = sbr.rel (0) target = $region33
    $region32: #{tpu_custom_call.1} parent=1 // pred_region
      %90 = dma.done [#allocation9], 16
    $region33: #{tpu_custom_call.1} parent=1 // pred_fallthru
      _
    %91 = vsyncpa [#allocation3], 1
    %92 = vsyncpa [#allocation6], 1
    %93 = vsyncpa [#allocation4], 1
    %94 = vsyncpa [#allocation9], 1

</llo_original>
